<compile_context>
chip_gen: v7x
topology: tpu7x:2x2x1
jax: 0.10.0
libtpu: 0.0.40
codegen_flags: <defaults>
</compile_context>

<pallas_src>
import jax
import jax.numpy as jnp
from jax.experimental import pallas as pl
from jax.experimental.pallas import tpu as pltpu

_LANE = 128
_MIN_L_TILE = 2048            # keeps each strided DMA row-chunk >= 8 KiB (f32)
_BATCH_TILE_BYTES = 4 << 20   # target input bytes per grid step (small-L path)


# ---------------------------------------------------------------------------
# Kernels
# ---------------------------------------------------------------------------
def _fl_conv_lane_kernel(x_ref, w_ref, b_ref, o_ref):
    """Large-L path: one batch element, lane-dense L tile.

    x_ref : (1, C, TL)   w_ref : (1, C)   b_ref : (1, 1) SMEM   o_ref : (1, 1, TL)
    """
    x = x_ref[0]                                                       # (C, TL)
    out = jnp.dot(w_ref[...], x, preferred_element_type=jnp.float32)  # (1, TL)
    o_ref[0] = (out + b_ref[0, 0]).astype(o_ref.dtype)


def _fl_conv_batch_kernel(x_ref, w_ref, b_ref, o_ref):
    """Small-L path: batch-tiled dense matmul against a block-diagonal weight.

    x_ref : (TB, C*L)   w_ref : (C*L, L)   b_ref : (1, 1) SMEM   o_ref : (TB, L)
    """
    out = jnp.dot(x_ref[...], w_ref[...], preferred_element_type=jnp.float32)
    o_ref[...] = (out + b_ref[0, 0]).astype(o_ref.dtype)


# ---------------------------------------------------------------------------
# Tile selection helpers
# ---------------------------------------------------------------------------
def _pick_l_tile(L, max_tile, split_for_two_cores=False):
    """Lane-dense tile along L obeying the (8,128) block rule."""
    if L <= _LANE:
        return L                                  # full-extent block is legal
    aligned_l = (L // _LANE) * _LANE              # largest 128-multiple <= L
    max_tile = max(_LANE, (max_tile // _LANE) * _LANE)
    tl = min(L if L % _LANE == 0 else aligned_l, max_tile)
    # Floor: keep each of the C strided DMA row-chunks >= ~8 KiB.
    tl = max(tl, min(_MIN_L_TILE, aligned_l))
    # v7x has 2 TensorCores: when N == 1 make sure the "parallel" grid along L
    # has >= 2 steps (costs one extra ~0.35 us step on v5e/v6e -- negligible).
    if split_for_two_cores and (L + tl - 1) // tl < 2 and L >= 2 * _MIN_L_TILE:
        half = -(-L // 2)
        tl = min(tl, -(-half // _LANE) * _LANE)
    return int(tl)


def _pick_batch_tile(N, C, L, itemsize, target_bytes=_BATCH_TILE_BYTES):
    """Batch tile for the small-L path (block second-to-last dim rule: %8 or full)."""
    row_bytes = C * L * itemsize
    tb = max(1, target_bytes // row_bytes)
    if tb >= N:
        if N >= 16:
            # Keep >= 2 grid steps so both v7x TensorCores get work.
            tb = -(-((N + 1) // 2) // 8) * 8
        else:
            tb = N                              # full-extent block
    else:
        tb = max(8, (tb // 8) * 8)
    return int(tb)


def _vmem_limit(footprint_bytes):
    # >= every generation's default scoped limit we rely on, <= v7x physical.
    return int(min(48 << 20, max(32 << 20, footprint_bytes)))


# ---------------------------------------------------------------------------
# Forward paths
# ---------------------------------------------------------------------------
def _forward_lane_tiled(z_prime, w_eff, b_eff, max_l_tile):
    N, C, L = z_prime.shape
    itemsize = z_prime.dtype.itemsize

    # Cap TL so double-buffered input stays <= 16 MiB (=> total well under
    # v7x's 64 MiB physical VMEM even with outputs and headroom).
    max_l_tile = min(max_l_tile, max(_LANE, (16 << 20) // (C * itemsize)))
    TL = _pick_l_tile(L, max_l_tile, split_for_two_cores=(N == 1))
    grid = (N, (L + TL - 1) // TL)

    in_block = C * TL * itemsize
    out_block = TL * itemsize
    footprint = 2 * (in_block + out_block) + 2 * C * itemsize + (1 << 20)

    ce = pl.CostEstimate(
        flops=2 * N * C * L,
        transcendentals=0,
        bytes_accessed=N * C * L * itemsize + N * L * itemsize + C * itemsize)

    return pl.pallas_call(
        _fl_conv_lane_kernel,
        out_shape=jax.ShapeDtypeStruct((N, 1, L), z_prime.dtype),
        grid=grid,
        in_specs=[
            pl.BlockSpec((1, C, TL), lambda n, j: (n, 0, j)),
            pl.BlockSpec((1, C), lambda n, j: (0, 0)),
            pl.BlockSpec(memory_space=pltpu.MemorySpace.SMEM),
        ],
        out_specs=pl.BlockSpec((1, 1, TL), lambda n, j: (n, 0, j)),
        compiler_params=pltpu.CompilerParams(
            dimension_semantics=("parallel", "parallel"),
            vmem_limit_bytes=_vmem_limit(footprint)),
        cost_estimate=ce,
    )(z_prime, w_eff, b_eff)


def _forward_small_l(z_prime, w_eff, b_eff):
    N, C, L = z_prime.shape
    itemsize = z_prime.dtype.itemsize
    CL = C * L

    # Free row-major reshape: (N, C, L) -> (N, C*L); contiguous blocks per step.
    x2 = z_prime.reshape(N, CL)
    # Block-diagonal expansion of the fused (1, C) weight row:
    #   W_big[c*L + i, j] = w_eff[0, c] * (i == j)   -> out = x2 @ W_big
    w_big = jnp.kron(w_eff.reshape(-1, 1), jnp.eye(L, dtype=w_eff.dtype))  # (CL, L)

    TB = _pick_batch_tile(N, C, L, itemsize)
    grid = ((N + TB - 1) // TB,)

    footprint = (2 * (TB * CL + TB * L) * itemsize
                 + 2 * CL * L * itemsize + (1 << 20))

    ce = pl.CostEstimate(
        flops=2 * N * CL * L,
        transcendentals=0,
        bytes_accessed=N * CL * itemsize + N * L * itemsize + CL * L * itemsize)

    out2d = pl.pallas_call(
        _fl_conv_batch_kernel,
        out_shape=jax.ShapeDtypeStruct((N, L), z_prime.dtype),
        grid=grid,
        in_specs=[
            pl.BlockSpec((TB, CL), lambda i: (i, 0)),
            pl.BlockSpec((CL, L), lambda i: (0, 0)),
            pl.BlockSpec(memory_space=pltpu.MemorySpace.SMEM),
        ],
        out_specs=pl.BlockSpec((TB, L), lambda i: (i, 0)),
        compiler_params=pltpu.CompilerParams(
            dimension_semantics=("parallel",),
            vmem_limit_bytes=_vmem_limit(footprint)),
        cost_estimate=ce,
    )(x2, w_big, b_eff)
    return out2d.reshape(N, 1, L)


def fl_conv_forward(z_prime, w1, b1, w2, b2, max_l_tile=65536):
    """z_prime: (N, D', L) float32 (PyTorch NCL layout). Returns (N, 1, L).

    w1: (D'/2, D'), b1: (D'/2,), w2: (1, D'/2), b2: (1,)  -- Conv1d(k=1) params.
    """
    N, C, L = z_prime.shape
    itemsize = z_prime.dtype.itemsize

    # Exact algebraic fusion of the two k=1 convs (no ReLU between them).
    # NOTE: changes f32 rounding order vs the two-conv reference (benign at
    # C=32; document for much larger C / ill-conditioned weights).
    w_eff = jnp.dot(w2, w1)                       # (1, C)
    b_eff = (jnp.dot(w2, b1) + b2).reshape(1, 1)  # (1, 1)

    # Small-L production regime: batch-tiled dense-matmul path (guard the
    # block-diagonal weight size so the path never blows up VMEM for huge C).
    if L <= _LANE and C * L * L * itemsize <= (4 << 20):
        return _forward_small_l(z_prime, w_eff, b_eff)
    return _forward_lane_tiled(z_prime, w_eff, b_eff, max_l_tile)


def _reference(z_prime, w1, b1, w2, b2):
    """Pure-JAX reference matching PyTorch Conv1d(k=1) semantics (un-fused)."""
    h = jnp.einsum("ncl,oc->nol", z_prime, w1) + b1[None, :, None]
    out = jnp.einsum("ncl,oc->nol", h, w2) + b2[None, :, None]
    return out


if __name__ == "__main__":
    key = jax.random.PRNGKey(0)
    (k_w1, k_b1, k_w2, k_b2,
     k_x1, k_x2, k_x3, k_x4, k_x5) = jax.random.split(key, 9)

    # cfg.model.fer.hidden_size = D' = 32 ; production-like seq length L = 16.
    D_prime = 32
    D_half = D_prime // 2

    w1 = jax.random.normal(k_w1, (D_half, D_prime), dtype=jnp.float32) * 0.1
    b1 = jax.random.normal(k_b1, (D_half,), dtype=jnp.float32) * 0.1
    w2 = jax.random.normal(k_w2, (1, D_half), dtype=jnp.float32) * 0.1
    b2 = jax.random.normal(k_b2, (1,), dtype=jnp.float32) * 0.1

    def check(z, **kw):
        out = jax.block_until_ready(fl_conv_forward(z, w1, b1, w2, b2, **kw))
        ref = _reference(z, w1, b1, w2, b2)
        assert out.shape == ref.shape, (out.shape, ref.shape)
        assert jnp.allclose(out, ref, atol=1e-4, rtol=1e-4), "mismatch vs reference"

    # 1) Production shape -> small-L batch-tiled path, single grid step.
    check(jax.random.normal(k_x1, (2, D_prime, 16), dtype=jnp.float32))
    # 2) Small-L path with batch tiling: 2 grid steps + ragged batch tail.
    check(jax.random.normal(k_x2, (20, D_prime, 16), dtype=jnp.float32))
    # 3) Lane-tiled path, L a multiple of 128 -> grid (N, L // TL) = (2, 2).
    check(jax.random.normal(k_x3, (2, D_prime, 4096), dtype=jnp.float32),
          max_l_tile=2048)
    # 4) Lane-tiled path, ragged L (not a multiple of 128): masked tail block.
    check(jax.random.normal(k_x4, (1, D_prime, 4000), dtype=jnp.float32),
          max_l_tile=2048)
    # 5) N == 1 with a single big tile -> L is split so both v7x TCs get work.
    check(jax.random.normal(k_x5, (1, D_prime, 8192), dtype=jnp.float32))

    print("KERNEL_OK")
</pallas_src>

<mosaic_0001>
module attributes {stable_mosaic.version = 11 : i64} {
  func.func @_fl_conv_batch_kernel(%arg0: i32, %arg1: memref<2x512xf32, #tpu.memory_space<vmem>>, %arg2: memref<512x16xf32, #tpu.memory_space<vmem>>, %arg3: memref<1x1xf32, #tpu.memory_space<smem>>, %arg4: memref<2x16xf32, #tpu.memory_space<vmem>>) attributes {dimension_semantics = [#tpu.dimension_semantics<parallel>], iteration_bounds = array<i64: 1>, scalar_prefetch = 0 : i64, scratch_operands = 0 : i64, tpu.core_type = #tpu.core_type<tc>, window_params = [{transform_indices = @transform_0, window_bounds = array<i64: 2, 512>}, {pipeline_mode = #tpu.pipeline_mode<synchronous>, transform_indices = @transform_1, window_bounds = array<i64: 512, 16>}, {transform_indices = @transform_2, window_bounds = array<i64: 1, 1>}, {transform_indices = @transform_3, window_bounds = array<i64: 2, 16>}]} {
    %c0 = arith.constant 0 : index
    %c0_0 = arith.constant 0 : index
    %0 = vector.load %arg1[%c0, %c0_0] : memref<2x512xf32, #tpu.memory_space<vmem>>, vector<2x512xf32>
    %c0_1 = arith.constant 0 : index
    %c0_2 = arith.constant 0 : index
    %1 = vector.load %arg2[%c0_1, %c0_2] : memref<512x16xf32, #tpu.memory_space<vmem>>, vector<512x16xf32>
    %cst = arith.constant dense<0.000000e+00> : vector<2x16xf32>
    %2 = tpu.matmul %0, %1, %cst {dimension_numbers = #tpu.dot_dimension_numbers<[1], [0], [0], [1], [0, 0, 1, 1], [], []>} : vector<2x512xf32>, vector<512x16xf32>, vector<2x16xf32> -> vector<2x16xf32>
    %c0_3 = arith.constant 0 : index
    %c0_4 = arith.constant 0 : index
    %3 = memref.load %arg3[%c0_3, %c0_4] : memref<1x1xf32, #tpu.memory_space<smem>>
    %4 = vector.broadcast %3 : f32 to vector<2x16xf32>
    %5 = arith.addf %2, %4 : vector<2x16xf32>
    %c0_5 = arith.constant 0 : index
    %c0_6 = arith.constant 0 : index
    %6 = vector.load %arg4[%c0_5, %c0_6] : memref<2x16xf32, #tpu.memory_space<vmem>>, vector<2x16xf32>
    tpu.vector_store %arg4[%c0_5, %c0_6], %5 {strides = array<i32>} : memref<2x16xf32, #tpu.memory_space<vmem>>, vector<2x16xf32>,
    return
  }
  func.func @transform_0(%arg0: i32) -> (i32, i32) {
    %c0_i32 = arith.constant 0 : i32
    %c0_i32_0 = arith.constant 0 : i32
    return %arg0, %c0_i32 : i32, i32
  }
  func.func @transform_1(%arg0: i32) -> (i32, i32) {
    %c0_i32 = arith.constant 0 : i32
    %c0_i32_0 = arith.constant 0 : i32
    %c0_i32_1 = arith.constant 0 : i32
    return %c0_i32, %c0_i32_0 : i32, i32
  }
  func.func @transform_2(%arg0: i32) -> (i32, i32) {
    %c0_i32 = arith.constant 0 : i32
    %c0_i32_0 = arith.constant 0 : i32
    %c0_i32_1 = arith.constant 0 : i32
    return %c0_i32, %c0_i32_0 : i32, i32
  }
  func.func @transform_3(%arg0: i32) -> (i32, i32) {
    %c0_i32 = arith.constant 0 : i32
    %c0_i32_0 = arith.constant 0 : i32
    return %arg0, %c0_i32 : i32, i32
  }
}

</mosaic_0001>

<llo_original>
// kernel: tpu_custom_call.1
$region0: #{tpu_custom_call.1}
  #allocation0 [shape = 'u32[]', space=smem, size = 0x4, offset = 0x4, fixed_abs, tag = 'smem constant byte address 0x4 - core index']
  #allocation1 [shape = 'u32[144,128]{1,0:T(1,128)}', space=vmem, size = 0x12000, scoped, tag = 'internal scratch']
  #allocation2 [shape = 'f32[1,1]{1,0:T(1,128)S(6)}', space=smem, size = 0x200, scoped, tag = 'scoped memory for tpu_custom_call.1']
  %s0 = inlined_call_operand.vmem [shape: f32[2,512], index: 0, kind: input, shape index: {}]
  %s1 = inlined_call_operand.vmem [shape: f32[512,16], index: 1, kind: input, shape index: {}]
  %s2 = inlined_call_operand.<no memory space> [shape: f32[1,1], index: 2, kind: input, shape index: {}]
  %s3 = inlined_call_operand.hbm [shape: f32[2,16], index: 3, kind: output, shape index: {}]
  %s4 = sld [smem:[#allocation0]]
  $region22: #{tpu_custom_call.1} parent=0
    _
  %s6 = ssub.s32 1, %s4
  %s7 = scalar_select 0, %s6, %s4
  %8 = sst [smem:[#allocation2]] %s2
  $region1: #{tpu_custom_call.1} parent=0
    #allocation3 [shape = 'u8[1024]{0}', space=vmem, size = 0x400, scoped, tag = 'output window, operand 0, single buffered']
    #allocation4 [shape = 's32[1]{0}', space=sflag, size = 0x4, scoped, tag = 'scoped memory for tpu_custom_call.1']
    %9 = vsyncpa [#allocation4], 0
    // Predicated region
    $region2: #{tpu_custom_call.1} parent=1 // pred_check
      _
    $region3: #{tpu_custom_call.1} parent=1 // pred_check_branch
      %11 = sbr.rel (0) target = $region5
    $region4: #{tpu_custom_call.1} parent=1 // pred_region
      _
    $region5: #{tpu_custom_call.1} parent=1 // pred_fallthru
      _
    // Predicated region
    $region6: #{tpu_custom_call.1} parent=1 // pred_check
      _
    $region7: #{tpu_custom_call.1} parent=1 // pred_check_branch
      %13 = sbr.rel (0) target = $region9
    $region8: #{tpu_custom_call.1} parent=1 // pred_region
      _
    $region9: #{tpu_custom_call.1} parent=1 // pred_fallthru
      _
    // Predicated region
    $region10: #{tpu_custom_call.1} parent=1 // pred_check
      _
    $region11: #{tpu_custom_call.1} parent=1 // pred_check_branch
      %15 = sbr.rel (0) target = $region13
    $region12: #{tpu_custom_call.1} parent=1 // pred_region
      _
    $region13: #{tpu_custom_call.1} parent=1 // pred_fallthru
      _
    %v16 = vld [vmem:[%s0] sm:$0xff]
    %v17 = vld [vmem:[%s1] sm:$0xff]
    %v18 = vld [vmem:[%s1 + $0x8] sm:$0xff]
    %v19 = vld [vmem:[%s1 + $0x10] sm:$0xff]
    %v20 = vld [vmem:[%s1 + $0x18] sm:$0xff]
    %v21 = vld [vmem:[%s1 + $0x20] sm:$0xff]
    %v22 = vld [vmem:[%s1 + $0x28] sm:$0xff]
    %v23 = vld [vmem:[%s1 + $0x30] sm:$0xff]
    %v24 = vld [vmem:[%s1 + $0x38] sm:$0xff]
    %v25 = vld [vmem:[%s1 + $0x40] sm:$0xff]
    %v26 = vld [vmem:[%s1 + $0x48] sm:$0xff]
    %v27 = vld [vmem:[%s1 + $0x50] sm:$0xff]
    %v28 = vld [vmem:[%s1 + $0x58] sm:$0xff]
    %v29 = vld [vmem:[%s1 + $0x60] sm:$0xff]
    %v30 = vld [vmem:[%s1 + $0x68] sm:$0xff]
    %v31 = vld [vmem:[%s1 + $0x70] sm:$0xff]
    %v32 = vld [vmem:[%s1 + $0x78] sm:$0xff]
    %v33 = vld [vmem:[%s1 + $0x80] sm:$0xff]
    %v34 = vld [vmem:[%s1 + $0x88] sm:$0xff]
    %v35 = vld [vmem:[%s1 + $0x90] sm:$0xff]
    %v36 = vld [vmem:[%s1 + $0x98] sm:$0xff]
    %v37 = vld [vmem:[%s1 + $0xa0] sm:$0xff]
    %v38 = vld [vmem:[%s1 + $0xa8] sm:$0xff]
    %v39 = vld [vmem:[%s1 + $0xb0] sm:$0xff]
    %v40 = vld [vmem:[%s1 + $0xb8] sm:$0xff]
    %v41 = vld [vmem:[%s1 + $0xc0] sm:$0xff]
    %v42 = vld [vmem:[%s1 + $0xc8] sm:$0xff]
    %v43 = vld [vmem:[%s1 + $0xd0] sm:$0xff]
    %v44 = vld [vmem:[%s1 + $0xd8] sm:$0xff]
    %v45 = vld [vmem:[%s1 + $0xe0] sm:$0xff]
    %v46 = vld [vmem:[%s1 + $0xe8] sm:$0xff]
    %v47 = vld [vmem:[%s1 + $0xf0] sm:$0xff]
    %v48 = vld [vmem:[%s1 + $0xf8] sm:$0xff]
    %v49 = vld [vmem:[%s1 + $0x100] sm:$0xff]
    %v50 = vld [vmem:[%s1 + $0x108] sm:$0xff]
    %v51 = vld [vmem:[%s1 + $0x110] sm:$0xff]
    %v52 = vld [vmem:[%s1 + $0x118] sm:$0xff]
    %v53 = vld [vmem:[%s1 + $0x120] sm:$0xff]
    %v54 = vld [vmem:[%s1 + $0x128] sm:$0xff]
    %v55 = vld [vmem:[%s1 + $0x130] sm:$0xff]
    %v56 = vld [vmem:[%s1 + $0x138] sm:$0xff]
    %v57 = vld [vmem:[%s1 + $0x140] sm:$0xff]
    %v58 = vld [vmem:[%s1 + $0x148] sm:$0xff]
    %v59 = vld [vmem:[%s1 + $0x150] sm:$0xff]
    %v60 = vld [vmem:[%s1 + $0x158] sm:$0xff]
    %v61 = vld [vmem:[%s1 + $0x160] sm:$0xff]
    %v62 = vld [vmem:[%s1 + $0x168] sm:$0xff]
    %v63 = vld [vmem:[%s1 + $0x170] sm:$0xff]
    %v64 = vld [vmem:[%s1 + $0x178] sm:$0xff]
    %v65 = vld [vmem:[%s1 + $0x180] sm:$0xff]
    %v66 = vld [vmem:[%s1 + $0x188] sm:$0xff]
    %v67 = vld [vmem:[%s1 + $0x190] sm:$0xff]
    %v68 = vld [vmem:[%s1 + $0x198] sm:$0xff]
    %v69 = vld [vmem:[%s1 + $0x1a0] sm:$0xff]
    %v70 = vld [vmem:[%s1 + $0x1a8] sm:$0xff]
    %v71 = vld [vmem:[%s1 + $0x1b0] sm:$0xff]
    %v72 = vld [vmem:[%s1 + $0x1b8] sm:$0xff]
    %v73 = vld [vmem:[%s1 + $0x1c0] sm:$0xff]
    %v74 = vld [vmem:[%s1 + $0x1c8] sm:$0xff]
    %v75 = vld [vmem:[%s1 + $0x1d0] sm:$0xff]
    %v76 = vld [vmem:[%s1 + $0x1d8] sm:$0xff]
    %v77 = vld [vmem:[%s1 + $0x1e0] sm:$0xff]
    %v78 = vld [vmem:[%s1 + $0x1e8] sm:$0xff]
    %v79 = vld [vmem:[%s1 + $0x1f0] sm:$0xff]
    %v80 = vld [vmem:[%s1 + $0x1f8] sm:$0xff]
    %s81 = sld [smem:[#allocation2]]
    %v82 = vstv %s81
    %v84 = vcombine.high %v16, %v16
    %v86 = vunpack.c.l.s4 1983009808
    %v87 = vunpack.c.0.s8 %v86
    %v88 = vlaneseq
    %v89 = vshrl.u32 %v88, 7
    %v90 = vsub.s32 %v87, %v89
    %v91 = vrot.slane %v16, %v90
    %v93 = vunpack.c.l.s4 1983009808
    %v94 = vunpack.c.0.s8 %v93
    %v95 = vlaneseq
    %v96 = vshrl.u32 %v95, 7
    %v97 = vsub.s32 %v94, %v96
    %v98 = vrot.slane %v84, %v97
    %v99 = vcombine.high %v91, %v91
    %v100 = vcombine.high %v98, %v98
    %105 = vmatprep.subr.mxu0 0.0
    %106 = vmatpush1.msra.mxu0 %v17
    %107 = vmatprep.subr.mxu0 0.0
    %108 = vmatpush1.msra.mxu0 %v18
    %109 = vmatprep.subr.mxu0 0.0
    %110 = vmatpush1.msra.mxu0 %v19
    %111 = vmatprep.subr.mxu0 0.0
    %112 = vmatpush1.msra.mxu0 %v20
    %113 = vmatprep.subr.mxu0 0.0
    %114 = vmatpush1.msra.mxu0 %v21
    %115 = vmatprep.subr.mxu0 0.0
    %116 = vmatpush1.msra.mxu0 %v22
    %117 = vmatprep.subr.mxu0 0.0
    %118 = vmatpush1.msra.mxu0 %v23
    %119 = vmatprep.subr.mxu0 0.0
    %120 = vmatpush1.msra.mxu0 %v24
    %121 = vmatprep.subr.mxu0 0.0
    %122 = vmatpush1.msra.mxu0 %v25
    %123 = vmatprep.subr.mxu0 0.0
    %124 = vmatpush1.msra.mxu0 %v26
    %125 = vmatprep.subr.mxu0 0.0
    %126 = vmatpush1.msra.mxu0 %v27
    %127 = vmatprep.subr.mxu0 0.0
    %128 = vmatpush1.msra.mxu0 %v28
    %129 = vmatprep.subr.mxu0 0.0
    %130 = vmatpush1.msra.mxu0 %v29
    %131 = vmatprep.subr.mxu0 0.0
    %132 = vmatpush1.msra.mxu0 %v30
    %133 = vmatprep.subr.mxu0 0.0
    %134 = vmatpush1.msra.mxu0 %v31
    %135 = vmatprep.subr.mxu0 0.0
    %136 = vmatpush1.msra.mxu0 %v32
    %137 = vmatprep.subr.mxu0 0.0
    %138 = vmatpush1.msra.mxu0 %v33
    %139 = vmatprep.subr.mxu0 0.0
    %140 = vmatpush1.msra.mxu0 %v34
    %141 = vmatprep.subr.mxu0 0.0
    %142 = vmatpush1.msra.mxu0 %v35
    %143 = vmatprep.subr.mxu0 0.0
    %144 = vmatpush1.msra.mxu0 %v36
    %145 = vmatprep.subr.mxu0 0.0
    %146 = vmatpush1.msra.mxu0 %v37
    %147 = vmatprep.subr.mxu0 0.0
    %148 = vmatpush1.msra.mxu0 %v38
    %149 = vmatprep.subr.mxu0 0.0
    %150 = vmatpush1.msra.mxu0 %v39
    %151 = vmatprep.subr.mxu0 0.0
    %152 = vmatpush1.msra.mxu0 %v40
    %153 = vmatprep.subr.mxu0 0.0
    %154 = vmatpush1.msra.mxu0 %v41
    %155 = vmatprep.subr.mxu0 0.0
    %156 = vmatpush1.msra.mxu0 %v42
    %157 = vmatprep.subr.mxu0 0.0
    %158 = vmatpush1.msra.mxu0 %v43
    %159 = vmatprep.subr.mxu0 0.0
    %160 = vmatpush1.msra.mxu0 %v44
    %161 = vmatprep.subr.mxu0 0.0
    %162 = vmatpush1.msra.mxu0 %v45
    %163 = vmatprep.subr.mxu0 0.0
    %164 = vmatpush1.msra.mxu0 %v46
    %165 = vmatprep.subr.mxu0 0.0
    %166 = vmatpush1.msra.mxu0 %v47
    %167 = vmatprep.subr.mxu0 0.0
    %168 = vmatpush1.msra.mxu0 %v48
    %169 = vmatprep.mubr.f32.mxu0 %v99
    %170 = vmatmul.mubr.f32.gmra.mrb[0].mxu0 %v91
    %v171 = vpop.f32.mrb[0].mxu0
    %v172 = vadd.f32 %v82, %v171
    %v173 = vpop.f32.mrb[0].mxu0
    %174 = vdwg.mxu0
    %175 = vmatprep.subr.mxu0 0.0
    %176 = vmatpush1.msra.mxu0 %v49
    %177 = vmatprep.subr.mxu0 0.0
    %178 = vmatpush1.msra.mxu0 %v50
    %179 = vmatprep.subr.mxu0 0.0
    %180 = vmatpush1.msra.mxu0 %v51
    %181 = vmatprep.subr.mxu0 0.0
    %182 = vmatpush1.msra.mxu0 %v52
    %183 = vmatprep.subr.mxu0 0.0
    %184 = vmatpush1.msra.mxu0 %v53
    %185 = vmatprep.subr.mxu0 0.0
    %186 = vmatpush1.msra.mxu0 %v54
    %187 = vmatprep.subr.mxu0 0.0
    %188 = vmatpush1.msra.mxu0 %v55
    %189 = vmatprep.subr.mxu0 0.0
    %190 = vmatpush1.msra.mxu0 %v56
    %191 = vmatprep.subr.mxu0 0.0
    %192 = vmatpush1.msra.mxu0 %v57
    %193 = vmatprep.subr.mxu0 0.0
    %194 = vmatpush1.msra.mxu0 %v58
    %195 = vmatprep.subr.mxu0 0.0
    %196 = vmatpush1.msra.mxu0 %v59
    %197 = vmatprep.subr.mxu0 0.0
    %198 = vmatpush1.msra.mxu0 %v60
    %199 = vmatprep.subr.mxu0 0.0
    %200 = vmatpush1.msra.mxu0 %v61
    %201 = vmatprep.subr.mxu0 0.0
    %202 = vmatpush1.msra.mxu0 %v62
    %203 = vmatprep.subr.mxu0 0.0
    %204 = vmatpush1.msra.mxu0 %v63
    %205 = vmatprep.subr.mxu0 0.0
    %206 = vmatpush1.msra.mxu0 %v64
    %207 = vmatprep.subr.mxu0 0.0
    %208 = vmatpush1.msra.mxu0 %v65
    %209 = vmatprep.subr.mxu0 0.0
    %210 = vmatpush1.msra.mxu0 %v66
    %211 = vmatprep.subr.mxu0 0.0
    %212 = vmatpush1.msra.mxu0 %v67
    %213 = vmatprep.subr.mxu0 0.0
    %214 = vmatpush1.msra.mxu0 %v68
    %215 = vmatprep.subr.mxu0 0.0
    %216 = vmatpush1.msra.mxu0 %v69
    %217 = vmatprep.subr.mxu0 0.0
    %218 = vmatpush1.msra.mxu0 %v70
    %219 = vmatprep.subr.mxu0 0.0
    %220 = vmatpush1.msra.mxu0 %v71
    %221 = vmatprep.subr.mxu0 0.0
    %222 = vmatpush1.msra.mxu0 %v72
    %223 = vmatprep.subr.mxu0 0.0
    %224 = vmatpush1.msra.mxu0 %v73
    %225 = vmatprep.subr.mxu0 0.0
    %226 = vmatpush1.msra.mxu0 %v74
    %227 = vmatprep.subr.mxu0 0.0
    %228 = vmatpush1.msra.mxu0 %v75
    %229 = vmatprep.subr.mxu0 0.0
    %230 = vmatpush1.msra.mxu0 %v76
    %231 = vmatprep.subr.mxu0 0.0
    %232 = vmatpush1.msra.mxu0 %v77
    %233 = vmatprep.subr.mxu0 0.0
    %234 = vmatpush1.msra.mxu0 %v78
    %235 = vmatprep.subr.mxu0 0.0
    %236 = vmatpush1.msra.mxu0 %v79
    %237 = vmatprep.subr.mxu0 0.0
    %238 = vmatpush1.msra.mxu0 %v80
    %239 = vmatprep.mubr.f32.mxu0 %v100
    %240 = vmatmul.mubr.f32.gmra.mrb[0].mxu0 %v98
    %v241 = vpop.f32.mrb[0].mxu0
    %v242 = vadd.f32 %v172, %v241
    %v243 = vpop.f32.mrb[0].mxu0
    %244 = vdwg.mxu0
    %vm245 = vcmask 123904
    %246 = vst.msk [vmem:[#allocation3] sm:$0x3] %vm245, %v242
    // Predicated region
    $region14: #{tpu_custom_call.1} parent=1 // pred_check
      _
    $region15: #{tpu_custom_call.1} parent=1 // pred_check_branch
      %248 = sbr.rel (0) target = $region17
    $region16: #{tpu_custom_call.1} parent=1 // pred_region
      %s250 = ssub.s32 32, 32
      %251 = vsyncadd [#allocation4], %s250
      %s253 = sshll.u32 [#allocation3], 4
      %s254 = int_to_ptr.vmem [resolvable:$true] %s253
      %256 = dma.vmem_to_hbm [thread:$0]  %s254, 32, %s3, [#allocation4]
    $region17: #{tpu_custom_call.1} parent=1 // pred_fallthru
      _
    // Predicated region
    $region18: #{tpu_custom_call.1} parent=1 // pred_check
      _
    $region19: #{tpu_custom_call.1} parent=1 // pred_check_branch
      %258 = sbr.rel (0) target = $region21
    $region20: #{tpu_custom_call.1} parent=1 // pred_region
      %259 = dma.done [#allocation4], 32
    $region21: #{tpu_custom_call.1} parent=1 // pred_fallthru
      _
    %260 = vsyncpa [#allocation4], 1

</llo_original>
